<compile_context>
chip_gen: v7x
topology: tpu7x:2x2x1
jax: 0.10.0
libtpu: 0.0.40
codegen_flags: <defaults>
</compile_context>

<pallas_src>
import enum
import functools

import numpy as np
import jax
import jax.numpy as jnp
from jax.experimental import pallas as pl
from jax.experimental.pallas import tpu as pltpu


class Layout(enum.Enum):
    RGGB = (0, 1, 1, 2)
    GRBG = (1, 0, 2, 1)
    GBRG = (1, 2, 0, 1)
    BGGR = (2, 1, 1, 0)


def _index_from_layout(layout: Layout) -> np.ndarray:
    """3x2x2 int index into [c0, c1, c2, c3, x] per RGB channel / Bayer parity."""
    rggb = np.array([[4, 2], [3, 1], [0, 4], [4, 0], [1, 3], [2, 4]],
                    dtype=np.int32).reshape(3, 2, 2)
    table = {
        Layout.RGGB: rggb,
        Layout.GRBG: np.roll(rggb, 1, axis=-1),
        Layout.GBRG: np.roll(rggb, 1, axis=-2),
        Layout.BGGR: np.roll(rggb, (1, 1), axis=(-1, -2)),
    }
    return table[layout]


def _pick_tile_h(H: int, max_tile_h: int) -> int:
    """Largest multiple-of-8 divisor of H that is <= max_tile_h (keeps the
    BlockSpec (8,128)-aligned).  Falls back to the full height (block == full
    array dim, always legal)."""
    best = None
    t = 8
    while t <= min(H, max_tile_h):
        if H % t == 0:
            best = t
        t += 8
    return best if best is not None else H


def _debayer_kernel(x_ref, halo_ref, out_ref, *, index, tile_h, W, Wp):
    """x_ref   : (1, tile_h, Wp)    Bayer tile (width zero-padded to Wp).
       halo_ref: (1, 1, 2, Wp)      row above / row below this tile (reflect-
                                    corrected at the image top/bottom).
       out_ref : (1, 3, tile_h, Wp) RGB output tile."""
    x = x_ref[0]                                     # (tile_h, Wp)
    halo = halo_ref[0, 0]                            # (2, Wp)
    top = jnp.broadcast_to(halo[0:1, :], (tile_h, Wp))
    bot = jnp.broadcast_to(halo[1:2, :], (tile_h, Wp))

    rows = jax.lax.broadcasted_iota(jnp.int32, (tile_h, Wp), 0)
    cols = jax.lax.broadcasted_iota(jnp.int32, (tile_h, Wp), 1)

    # Vertical neighbours: sublane rolls (XLU) + halo fixup at the tile edges.
    up = jnp.where(rows == 0, top,
                   pltpu.roll(x, shift=1, axis=0))             # up[i]   = x[i-1]
    down = jnp.where(rows == tile_h - 1, bot,
                     pltpu.roll(x, shift=tile_h - 1, axis=0))   # down[i] = x[i+1]

    # Horizontal neighbour sum with 1-px reflect at columns 0 and W-1.
    # Lane rolls run on the XLU; the reflect fixups are single selects.
    def hsum(a):
        rl = pltpu.roll(a, shift=Wp - 1, axis=1)   # rl[j] = a[j+1]
        rr = pltpu.roll(a, shift=1, axis=1)        # rr[j] = a[j-1]
        left = jnp.where(cols == 0, rl, rr)        # reflect: left of col 0 is col 1
        right = jnp.where(cols == W - 1, rr, rl)   # reflect: right of col W-1 is col W-2
        return left + right

    vsum = up + down
    hs_c = hsum(x)       # left + right of the centre pixel
    hs_v = hsum(vsum)    # ul + ur + dl + dr (by linearity of hsum)

    c0 = 0.25 * (hs_c + vsum)   # 4-neighbour cross average
    c1 = 0.25 * hs_v            # diagonal average
    c2 = 0.5 * hs_c             # horizontal average
    c3 = 0.5 * vsum             # vertical average
    c4 = x                      # identity (original pixel)
    chans = (c0, c1, c2, c3, c4)

    # Bayer-parity gather.  tile_h is even, so local row parity == global.
    row_odd = (rows & 1) == 1
    col_odd = (cols & 1) == 1
    dt = out_ref.dtype
    for ch in range(3):
        even_row = jnp.where(col_odd, chans[int(index[ch, 0, 1])],
                             chans[int(index[ch, 0, 0])])
        odd_row = jnp.where(col_odd, chans[int(index[ch, 1, 1])],
                            chans[int(index[ch, 1, 0])])
        out_ref[0, ch] = jnp.where(row_odd, odd_row, even_row).astype(dt)


def debayer3x3(x: jax.Array, layout: Layout = Layout.RGGB,
               *, max_tile_h: int = 128) -> jax.Array:
    """x: (B, 1, H, W) float array -> (B, 3, H, W) RGB."""
    B, C, H, W = x.shape
    assert C == 1, "Debayer3x3 expects a single-channel Bayer image"
    assert H % 2 == 0 and W % 2 == 0, "Bayer pattern requires even H, W"

    index = _index_from_layout(layout)

    Wp = ((W + 127) // 128) * 128          # lane-dense working width
    tile_h = _pick_tile_h(H, max_tile_h)
    n_tiles = H // tile_h

    xs = x[:, 0]                           # (B, H, W)
    if Wp != W:
        xs = jnp.pad(xs, ((0, 0), (0, 0), (0, Wp - W)))   # (B, H, Wp)

    # Per-tile halo rows (row above / below each tile, reflected at the image
    # top/bottom).  Only 2*n_tiles rows -> negligible HBM traffic.
    starts = np.arange(n_tiles) * tile_h
    top_idx = np.where(starts == 0, 1, starts - 1)            # reflect: row -1 -> row 1
    bot_idx = np.where(starts + tile_h >= H, H - 2, starts + tile_h)  # row H -> row H-2
    halo_idx = np.stack([top_idx, bot_idx], axis=1).reshape(-1)
    halo = xs[:, halo_idx, :].reshape(B, n_tiles, 2, Wp)

    kernel = functools.partial(_debayer_kernel, index=index,
                               tile_h=tile_h, W=W, Wp=Wp)

    out = pl.pallas_call(
        kernel,
        out_shape=jax.ShapeDtypeStruct((B, 3, H, Wp), x.dtype),
        grid=(B, n_tiles),
        in_specs=[
            pl.BlockSpec((1, tile_h, Wp), lambda b, i: (b, i, 0)),
            pl.BlockSpec((1, 1, 2, Wp), lambda b, i: (b, i, 0, 0)),
        ],
        out_specs=pl.BlockSpec((1, 3, tile_h, Wp), lambda b, i: (b, 0, i, 0)),
        compiler_params=pltpu.CompilerParams(
            dimension_semantics=("parallel", "parallel"),
            vmem_limit_bytes=64 * 1024 * 1024,
        ),
    )(xs, halo)

    return out[..., :W] if Wp != W else out


def _reference_debayer(x: np.ndarray, layout: Layout = Layout.RGGB) -> np.ndarray:
    """Pure-numpy reference mirroring the PyTorch forward."""
    B, _, H, W = x.shape
    xp = np.pad(x[:, 0], ((0, 0), (1, 1), (1, 1)), mode="reflect")
    up, down = xp[:, 0:H, 1:W + 1], xp[:, 2:H + 2, 1:W + 1]
    left, right = xp[:, 1:H + 1, 0:W], xp[:, 1:H + 1, 2:W + 2]
    ul, ur = xp[:, 0:H, 0:W], xp[:, 0:H, 2:W + 2]
    dl, dr = xp[:, 2:H + 2, 0:W], xp[:, 2:H + 2, 2:W + 2]
    c = np.stack([
        0.25 * (up + down + left + right),
        0.25 * (ul + ur + dl + dr),
        0.5 * (left + right),
        0.5 * (up + down),
        x[:, 0],
    ], axis=1)  # (B, 5, H, W)
    index = _index_from_layout(layout)
    full_idx = np.tile(index, (1, H // 2, W // 2))  # (3, H, W)
    out = np.empty((B, 3, H, W), dtype=x.dtype)
    for ch in range(3):
        out[:, ch] = np.take_along_axis(
            c, full_idx[ch][None, None], axis=1)[:, 0]
    return out


if __name__ == "__main__":
    key = jax.random.PRNGKey(0)

    # Primary small test (single row tile).
    x = jax.random.uniform(key, (2, 1, 16, 16), dtype=jnp.float32)
    rgb = debayer3x3(x, Layout.RGGB)
    jax.block_until_ready(rgb)
    ref = _reference_debayer(np.asarray(x), Layout.RGGB)
    np.testing.assert_allclose(np.asarray(rgb), ref, rtol=1e-5, atol=1e-5)

    # Multi-row-tile path: exercises the per-tile halo rows and the reflect
    # boundary handling across tile seams.
    x2 = jax.random.uniform(jax.random.PRNGKey(1), (1, 1, 32, 16),
                            dtype=jnp.float32)
    rgb2 = debayer3x3(x2, Layout.RGGB, max_tile_h=8)
    jax.block_until_ready(rgb2)
    ref2 = _reference_debayer(np.asarray(x2), Layout.RGGB)
    np.testing.assert_allclose(np.asarray(rgb2), ref2, rtol=1e-5, atol=1e-5)

    print("KERNEL_OK")
</pallas_src>

<mosaic_0001>
module attributes {stable_mosaic.version = 11 : i64} {
  func.func @_debayer_kernel(%arg0: i32, %arg1: i32, %arg2: memref<1x16x128xf32, #tpu.memory_space<vmem>>, %arg3: memref<1x1x2x128xf32, #tpu.memory_space<vmem>>, %arg4: memref<1x3x16x128xf32, #tpu.memory_space<vmem>>) attributes {dimension_semantics = [#tpu.dimension_semantics<parallel>, #tpu.dimension_semantics<parallel>], iteration_bounds = array<i64: 2, 1>, scalar_prefetch = 0 : i64, scratch_operands = 0 : i64, tpu.core_type = #tpu.core_type<tc>, window_params = [{transform_indices = @transform_0, window_bounds = array<i64: 1, 16, 128>}, {transform_indices = @transform_1, window_bounds = array<i64: 1, 1, 2, 128>}, {transform_indices = @transform_2, window_bounds = array<i64: 1, 3, 16, 128>}]} {
    %c0 = arith.constant 0 : index
    %c0_0 = arith.constant 0 : index
    %c0_1 = arith.constant 0 : index
    %0 = vector.load %arg2[%c0, %c0_0, %c0_1] : memref<1x16x128xf32, #tpu.memory_space<vmem>>, vector<1x16x128xf32>
    %1 = vector.shape_cast %0 : vector<1x16x128xf32> to vector<16x128xf32>
    %c0_2 = arith.constant 0 : index
    %c0_3 = arith.constant 0 : index
    %c0_4 = arith.constant 0 : index
    %c0_5 = arith.constant 0 : index
    %2 = vector.load %arg3[%c0_2, %c0_3, %c0_4, %c0_5] : memref<1x1x2x128xf32, #tpu.memory_space<vmem>>, vector<1x1x2x128xf32>
    %3 = vector.shape_cast %2 : vector<1x1x2x128xf32> to vector<2x128xf32>
    %4 = vector.extract_strided_slice %3 {offsets = [0, 0], sizes = [1, 128], strides = [1, 1]} : vector<2x128xf32> to vector<1x128xf32>
    %5 = vector.shape_cast %4 : vector<1x128xf32> to vector<1x128xf32>
    %6 = vector.broadcast %5 : vector<1x128xf32> to vector<16x128xf32>
    %7 = vector.extract_strided_slice %3 {offsets = [1, 0], sizes = [1, 128], strides = [1, 1]} : vector<2x128xf32> to vector<1x128xf32>
    %8 = vector.shape_cast %7 : vector<1x128xf32> to vector<1x128xf32>
    %9 = vector.broadcast %8 : vector<1x128xf32> to vector<16x128xf32>
    %10 = tpu.iota {dimensions = array<i32: 0>} : vector<16x128xi32>
    %11 = tpu.iota {dimensions = array<i32: 1>} : vector<16x128xi32>
    %c0_i32 = arith.constant 0 : i32
    %12 = vector.broadcast %c0_i32 : i32 to vector<16x128xi32>
    %13 = arith.cmpi eq, %10, %12 : vector<16x128xi32>
    %c1_i32 = arith.constant 1 : i32
    %14 = tpu.dynamic_rotate %1 by %c1_i32 dim 0 : vector<16x128xf32>, i32 -> vector<16x128xf32>
    %15 = arith.select %13, %6, %14 : vector<16x128xi1>, vector<16x128xf32>
    %c15_i32 = arith.constant 15 : i32
    %16 = vector.broadcast %c15_i32 : i32 to vector<16x128xi32>
    %17 = arith.cmpi eq, %10, %16 : vector<16x128xi32>
    %c15_i32_6 = arith.constant 15 : i32
    %18 = tpu.dynamic_rotate %1 by %c15_i32_6 dim 0 : vector<16x128xf32>, i32 -> vector<16x128xf32>
    %19 = arith.select %17, %9, %18 : vector<16x128xi1>, vector<16x128xf32>
    %20 = arith.addf %15, %19 : vector<16x128xf32>
    %c127_i32 = arith.constant 127 : i32
    %21 = tpu.dynamic_rotate %1 by %c127_i32 dim 1 : vector<16x128xf32>, i32 -> vector<16x128xf32>
    %c1_i32_7 = arith.constant 1 : i32
    %22 = tpu.dynamic_rotate %1 by %c1_i32_7 dim 1 : vector<16x128xf32>, i32 -> vector<16x128xf32>
    %c0_i32_8 = arith.constant 0 : i32
    %23 = vector.broadcast %c0_i32_8 : i32 to vector<16x128xi32>
    %24 = arith.cmpi eq, %11, %23 : vector<16x128xi32>
    %25 = arith.select %24, %21, %22 : vector<16x128xi1>, vector<16x128xf32>
    %c15_i32_9 = arith.constant 15 : i32
    %26 = vector.broadcast %c15_i32_9 : i32 to vector<16x128xi32>
    %27 = arith.cmpi eq, %11, %26 : vector<16x128xi32>
    %28 = arith.select %27, %22, %21 : vector<16x128xi1>, vector<16x128xf32>
    %29 = arith.addf %25, %28 : vector<16x128xf32>
    %c127_i32_10 = arith.constant 127 : i32
    %30 = tpu.dynamic_rotate %20 by %c127_i32_10 dim 1 : vector<16x128xf32>, i32 -> vector<16x128xf32>
    %c1_i32_11 = arith.constant 1 : i32
    %31 = tpu.dynamic_rotate %20 by %c1_i32_11 dim 1 : vector<16x128xf32>, i32 -> vector<16x128xf32>
    %c0_i32_12 = arith.constant 0 : i32
    %32 = vector.broadcast %c0_i32_12 : i32 to vector<16x128xi32>
    %33 = arith.cmpi eq, %11, %32 : vector<16x128xi32>
    %34 = arith.select %33, %30, %31 : vector<16x128xi1>, vector<16x128xf32>
    %c15_i32_13 = arith.constant 15 : i32
    %35 = vector.broadcast %c15_i32_13 : i32 to vector<16x128xi32>
    %36 = arith.cmpi eq, %11, %35 : vector<16x128xi32>
    %37 = arith.select %36, %31, %30 : vector<16x128xi1>, vector<16x128xf32>
    %38 = arith.addf %34, %37 : vector<16x128xf32>
    %39 = arith.addf %29, %20 : vector<16x128xf32>
    %cst = arith.constant 2.500000e-01 : f32
    %40 = vector.broadcast %cst : f32 to vector<16x128xf32>
    %41 = arith.mulf %40, %39 : vector<16x128xf32>
    %cst_14 = arith.constant 2.500000e-01 : f32
    %42 = vector.broadcast %cst_14 : f32 to vector<16x128xf32>
    %43 = arith.mulf %42, %38 : vector<16x128xf32>
    %cst_15 = arith.constant 5.000000e-01 : f32
    %44 = vector.broadcast %cst_15 : f32 to vector<16x128xf32>
    %45 = arith.mulf %44, %29 : vector<16x128xf32>
    %cst_16 = arith.constant 5.000000e-01 : f32
    %46 = vector.broadcast %cst_16 : f32 to vector<16x128xf32>
    %47 = arith.mulf %46, %20 : vector<16x128xf32>
    %c1_i32_17 = arith.constant 1 : i32
    %48 = vector.broadcast %c1_i32_17 : i32 to vector<16x128xi32>
    %49 = arith.andi %10, %48 : vector<16x128xi32>
    %c1_i32_18 = arith.constant 1 : i32
    %50 = vector.broadcast %c1_i32_18 : i32 to vector<16x128xi32>
    %51 = arith.cmpi eq, %49, %50 : vector<16x128xi32>
    %c1_i32_19 = arith.constant 1 : i32
    %52 = vector.broadcast %c1_i32_19 : i32 to vector<16x128xi32>
    %53 = arith.andi %11, %52 : vector<16x128xi32>
    %c1_i32_20 = arith.constant 1 : i32
    %54 = vector.broadcast %c1_i32_20 : i32 to vector<16x128xi32>
    %55 = arith.cmpi eq, %53, %54 : vector<16x128xi32>
    %56 = arith.select %55, %45, %1 : vector<16x128xi1>, vector<16x128xf32>
    %57 = arith.select %55, %43, %47 : vector<16x128xi1>, vector<16x128xf32>
    %58 = arith.select %51, %57, %56 : vector<16x128xi1>, vector<16x128xf32>
    %c0_21 = arith.constant 0 : index
    %c0_22 = arith.constant 0 : index
    %c0_23 = arith.constant 0 : index
    %c0_24 = arith.constant 0 : index
    %59 = vector.load %arg4[%c0_21, %c0_22, %c0_23, %c0_24] : memref<1x3x16x128xf32, #tpu.memory_space<vmem>>, vector<1x1x16x128xf32>
    %60 = vector.shape_cast %59 : vector<1x1x16x128xf32> to vector<16x128xf32>
    %61 = vector.shape_cast %58 : vector<16x128xf32> to vector<1x1x16x128xf32>
    tpu.vector_store %arg4[%c0_21, %c0_22, %c0_23, %c0_24], %61 {strides = array<i32>} : memref<1x3x16x128xf32, #tpu.memory_space<vmem>>, vector<1x1x16x128xf32>,
    %62 = arith.select %55, %1, %41 : vector<16x128xi1>, vector<16x128xf32>
    %63 = arith.select %55, %41, %1 : vector<16x128xi1>, vector<16x128xf32>
    %64 = arith.select %51, %63, %62 : vector<16x128xi1>, vector<16x128xf32>
    %c0_25 = arith.constant 0 : index
    %c1 = arith.constant 1 : index
    %c0_26 = arith.constant 0 : index
    %c0_27 = arith.constant 0 : index
    %65 = vector.load %arg4[%c0_25, %c1, %c0_26, %c0_27] : memref<1x3x16x128xf32, #tpu.memory_space<vmem>>, vector<1x1x16x128xf32>
    %66 = vector.shape_cast %65 : vector<1x1x16x128xf32> to vector<16x128xf32>
    %67 = vector.shape_cast %64 : vector<16x128xf32> to vector<1x1x16x128xf32>
    tpu.vector_store %arg4[%c0_25, %c1, %c0_26, %c0_27], %67 {strides = array<i32>} : memref<1x3x16x128xf32, #tpu.memory_space<vmem>>, vector<1x1x16x128xf32>,
    %68 = arith.select %55, %47, %43 : vector<16x128xi1>, vector<16x128xf32>
    %69 = arith.select %55, %1, %45 : vector<16x128xi1>, vector<16x128xf32>
    %70 = arith.select %51, %69, %68 : vector<16x128xi1>, vector<16x128xf32>
    %c0_28 = arith.constant 0 : index
    %c2 = arith.constant 2 : index
    %c0_29 = arith.constant 0 : index
    %c0_30 = arith.constant 0 : index
    %71 = vector.load %arg4[%c0_28, %c2, %c0_29, %c0_30] : memref<1x3x16x128xf32, #tpu.memory_space<vmem>>, vector<1x1x16x128xf32>
    %72 = vector.shape_cast %71 : vector<1x1x16x128xf32> to vector<16x128xf32>
    %73 = vector.shape_cast %70 : vector<16x128xf32> to vector<1x1x16x128xf32>
    tpu.vector_store %arg4[%c0_28, %c2, %c0_29, %c0_30], %73 {strides = array<i32>} : memref<1x3x16x128xf32, #tpu.memory_space<vmem>>, vector<1x1x16x128xf32>,
    return
  }
  func.func @transform_0(%arg0: i32, %arg1: i32) -> (i32, i32, i32) {
    %c0_i32 = arith.constant 0 : i32
    %c0_i32_0 = arith.constant 0 : i32
    return %arg0, %arg1, %c0_i32 : i32, i32, i32
  }
  func.func @transform_1(%arg0: i32, %arg1: i32) -> (i32, i32, i32, i32) {
    %c0_i32 = arith.constant 0 : i32
    %c0_i32_0 = arith.constant 0 : i32
    %c0_i32_1 = arith.constant 0 : i32
    return %arg0, %arg1, %c0_i32, %c0_i32_0 : i32, i32, i32, i32
  }
  func.func @transform_2(%arg0: i32, %arg1: i32) -> (i32, i32, i32, i32) {
    %c0_i32 = arith.constant 0 : i32
    %c0_i32_0 = arith.constant 0 : i32
    %c0_i32_1 = arith.constant 0 : i32
    return %arg0, %c0_i32, %arg1, %c0_i32_0 : i32, i32, i32, i32
  }
}

</mosaic_0001>

<llo_original>
// kernel: tpu_custom_call.1
$region0: #{tpu_custom_call.1}
  #allocation0 [shape = 'u32[]', space=smem, size = 0x4, offset = 0x4, fixed_abs, tag = 'smem constant byte address 0x4 - core index']
  #allocation1 [shape = 'u32[144,128]{1,0:T(1,128)}', space=vmem, size = 0x12000, scoped, tag = 'internal scratch']
  %s0 = inlined_call_operand.hbm [shape: f32[2,16,128], index: 0, kind: input, shape index: {}]
  %s1 = inlined_call_operand.hbm [shape: f32[2,1,2,128], index: 1, kind: input, shape index: {}]
  %s2 = inlined_call_operand.hbm [shape: f32[2,3,16,128], index: 2, kind: output, shape index: {}]
  %s3 = sld [smem:[#allocation0]]
  $region49: #{tpu_custom_call.1} parent=0
    _
  %s5 = ssub.s32 1, %s3
  %s6 = scalar_select 0, %s5, %s3
  $region1: #{tpu_custom_call.1} parent=0
    #allocation2 [shape = 'u8[16384]{0}', space=vmem, size = 0x4000, scoped, tag = 'input window, operand 0']
    #allocation3 [shape = 's32[2]{0}', space=sflag, size = 0x8, scoped, tag = 'scoped memory for tpu_custom_call.1']
    #allocation4 [shape = 's32[2]{0}', space=sflag, size = 0x8, scoped, tag = 'scoped memory for tpu_custom_call.1']
    #allocation5 [shape = 'u8[2048]{0}', space=vmem, size = 0x800, scoped, tag = 'input window, operand 1']
    #allocation6 [shape = 's32[2]{0}', space=sflag, size = 0x8, scoped, tag = 'scoped memory for tpu_custom_call.1']
    #allocation7 [shape = 'u8[49152]{0}', space=vmem, size = 0xc000, scoped, tag = 'output window, operand 0']
    %7 = vsyncpa [#allocation3], 0
    %s8 = scalar_lea.sflag [#allocation3], 1
    %9 = vsyncpa %s8, 0
    %10 = vsyncpa [#allocation6], 0
    %s11 = scalar_lea.sflag [#allocation6], 1
    %12 = vsyncpa %s11, 0
    %13 = vsyncpa [#allocation4], 0
    %s14 = scalar_lea.sflag [#allocation4], 1
    %15 = vsyncpa %s14, 0
    loop: start=0, step=1, limit=4
    $region2: #{tpu_custom_call.1} parent=1 // loop_pre_header
      _
    $region3: #{tpu_custom_call.1} parent=1 // loop_header
      %s17 = sphi 0, %s21
      %p18 = scmp.ge.s32.totalorder %s17, 4
      %s24 = sphi 0, %s36
      %s25 = sphi 0, %s32
      %s26 = sphi 0, %s24
      %s27 = sphi 0, %s25
      %s28 = sphi 0, %s26
      %s29 = sphi 0, %s27
      %s41 = sphi 0, %s43
      %s44 = sphi 0, %s41
      %s45 = sphi 0, %s44
      %s61 = sphi 0, %s45
      %s69 = sphi 0, %s71
      %s72 = sphi 0, %s69
      %s73 = sphi 0, %s72
      %s89 = sphi 0, %s73
      %s97 = sphi 0, %s99
      %s100 = sphi 0, %s97
      %s101 = sphi 0, %s100
      %s117 = sphi 0, %s101
    $region4: #{tpu_custom_call.1} parent=1 // loop_header_branch
      %20 = sbr.rel (%p18) target = $region8
    $region5: #{tpu_custom_call.1} parent=1 // loop_body
      %s22 = ssub.s32 %s17, 1
      %s23 = ssub.s32 %s17, 2
      %s30 = sadd.s32 1, %s25
      %p31 = scmp.ge.s32.totalorder %s30, 1
      %s32 = scalar_select %p31, 0, %s30
      %s33 = sadd.s32 1, %s24
      %s34 = scalar_select %p31, %s33, %s24
      %p35 = scmp.ge.s32.totalorder %s34, 2
      %s36 = scalar_select %p35, 0, %s34
      %s37 = ssub.s32 %s24, %s36
      %s38 = ssub.s32 %s25, %s32
      %s39 = sor.u32 %s37, %s38
      %p40 = scmp.eq.s32.totalorder %s39, 0
      %s42 = sadd.s32 %s41, 1
      %s43 = scalar_select %p40, %s41, %s42
      %p46 = pneg %p40
      %p47 = scmp.eq.s32.totalorder %s17, 1
      %p48 = por %p46, %p47
      %p49 = scmp.ne.s32.totalorder %s41, %s44
      %p50 = scmp.eq.s32.totalorder %s17, 0
      %p51 = por %p49, %p50
      %p52 = scmp.ne.s32.totalorder %s41, %s44
      %p53 = scmp.eq.s32.totalorder %s22, 1
      %p54 = por %p52, %p53
      %p55 = scmp.ne.s32.totalorder %s44, %s45
      %p56 = scmp.eq.s32.totalorder %s22, 0
      %p57 = por %p55, %p56
      %p58 = scmp.ne.s32.totalorder %s44, %s45
      %p59 = scmp.eq.s32.totalorder %s23, 1
      %p60 = por %p58, %p59
      %p62 = scmp.ne.s32.totalorder %s45, %s61
      %p63 = scmp.eq.s32.totalorder %s23, 0
      %p64 = por %p62, %p63
      %s65 = ssub.s32 %s24, %s36
      %s66 = ssub.s32 %s25, %s32
      %s67 = sor.u32 %s65, %s66
      %p68 = scmp.eq.s32.totalorder %s67, 0
      %s70 = sadd.s32 %s69, 1
      %s71 = scalar_select %p68, %s69, %s70
      %p74 = pneg %p68
      %p75 = scmp.eq.s32.totalorder %s17, 1
      %p76 = por %p74, %p75
      %p77 = scmp.ne.s32.totalorder %s69, %s72
      %p78 = scmp.eq.s32.totalorder %s17, 0
      %p79 = por %p77, %p78
      %p80 = scmp.ne.s32.totalorder %s69, %s72
      %p81 = scmp.eq.s32.totalorder %s22, 1
      %p82 = por %p80, %p81
      %p83 = scmp.ne.s32.totalorder %s72, %s73
      %p84 = scmp.eq.s32.totalorder %s22, 0
      %p85 = por %p83, %p84
      %p86 = scmp.ne.s32.totalorder %s72, %s73
      %p87 = scmp.eq.s32.totalorder %s23, 1
      %p88 = por %p86, %p87
      %p90 = scmp.ne.s32.totalorder %s73, %s89
      %p91 = scmp.eq.s32.totalorder %s23, 0
      %p92 = por %p90, %p91
      %s93 = ssub.s32 %s24, %s36
      %s94 = ssub.s32 %s25, %s32
      %s95 = sor.u32 %s93, %s94
      %p96 = scmp.eq.s32.totalorder %s95, 0
      %s98 = sadd.s32 %s97, 1
      %s99 = scalar_select %p96, %s97, %s98
      %p102 = pneg %p96
      %p103 = scmp.eq.s32.totalorder %s17, 1
      %p104 = por %p102, %p103
      %p105 = scmp.ne.s32.totalorder %s97, %s100
      %p106 = scmp.eq.s32.totalorder %s17, 0
      %p107 = por %p105, %p106
      %p108 = scmp.ne.s32.totalorder %s97, %s100
      %p109 = scmp.eq.s32.totalorder %s22, 1
      %p110 = por %p108, %p109
      %p111 = scmp.ne.s32.totalorder %s100, %s101
      %p112 = scmp.eq.s32.totalorder %s22, 0
      %p113 = por %p111, %p112
      %p114 = scmp.ne.s32.totalorder %s100, %s101
      %p115 = scmp.eq.s32.totalorder %s23, 1
      %p116 = por %p114, %p115
      %p118 = scmp.ne.s32.totalorder %s101, %s117
      %p119 = scmp.eq.s32.totalorder %s23, 0
      %p120 = por %p118, %p119
      %p121 = scmp.le.s32.totalorder 1, %s17
      %p122 = scmp.lt.s32.totalorder %s17, 3
      %p123 = pnand %p121, %p122
      %p124 = pneg %p123
      // Predicated region
      $region9: #{tpu_custom_call.1} parent=5 // pred_check
        _
      $region10: #{tpu_custom_call.1} parent=5 // pred_check_branch
        %126 = sbr.rel (%p123) target = $region12
      $region11: #{tpu_custom_call.1} parent=5 // pred_region
        %s127 = ssub.s32 %s17, 1
      $region12: #{tpu_custom_call.1} parent=5 // pred_fallthru
        _
      %p128 = scmp.lt.s32.totalorder %s17, 2
      // Predicated region
      $region13: #{tpu_custom_call.1} parent=5 // pred_check
        %p129 = pneg %p128
      $region14: #{tpu_custom_call.1} parent=5 // pred_check_branch
        %131 = sbr.rel (%p129) target = $region16
      $region15: #{tpu_custom_call.1} parent=5 // pred_region
        // Predicated region
        $region17: #{tpu_custom_call.1} parent=15 // pred_check
          %p132 = pneg %p51
        $region18: #{tpu_custom_call.1} parent=15 // pred_check_branch
          %134 = sbr.rel (%p132) target = $region20
        $region19: #{tpu_custom_call.1} parent=15 // pred_region
          %s135 = sand.u32 %s41, 1
          %s136 = scalar_lea.sflag [#allocation3], %s135
          %s137 = sand.u32 %s41, 1
          %s138 = smul.addr %s137, 16
          %s139 = scalar_lea.vmem [#allocation2], %s138
          %s140 = smul.u32 2, %s25
          %s142 = ssub.s32 256, 256
          %143 = vsyncadd %s136, %s142
          %s144 = smul.addr %s24, 2
          %s145 = sadd.s32 %s140, %s144
          %s146 = smul.addr %s145, 128
          %s147 = scalar_lea.hbm %s0, %s146
          %s148 = sshll.u32 %s139, 4
          %s149 = int_to_ptr.vmem [resolvable:$true] %s148
          %154 = dma.hbm_to_vmem [thread:$0]  %s147, 256, %s149, %s136, 128, 128, 8
        $region20: #{tpu_custom_call.1} parent=15 // pred_fallthru
          _
        // Predicated region
        $region21: #{tpu_custom_call.1} parent=15 // pred_check
          %p155 = pneg %p79
        $region22: #{tpu_custom_call.1} parent=15 // pred_check_branch
          %157 = sbr.rel (%p155) target = $region24
        $region23: #{tpu_custom_call.1} parent=15 // pred_region
          %s158 = sand.u32 %s69, 1
          %s159 = scalar_lea.sflag [#allocation6], %s158
          %s160 = sand.u32 %s69, 1
          %s161 = smul.addr %s160, 2
          %s162 = scalar_lea.vmem [#allocation5], %s161
          %s164 = ssub.s32 32, 32
          %165 = vsyncadd %s159, %s164
          %s166 = sadd.s32 %s25, %s24
          %s167 = smul.addr %s166, 32
          %s168 = scalar_lea.hbm %s1, %s167
          %s170 = sshll.u32 %s162, 4
          %s171 = int_to_ptr.vmem [resolvable:$true] %s170
          %173 = dma.hbm_to_vmem [thread:$0]  %s168, 32, %s171, %s159
        $region24: #{tpu_custom_call.1} parent=15 // pred_fallthru
          _
      $region16: #{tpu_custom_call.1} parent=5 // pred_fallthru
        _
      %p174 = scmp.le.s32.totalorder 1, %s17
      %p175 = scmp.lt.s32.totalorder %s17, 3
      %p176 = pnand %p174, %p175
      %p177 = pneg %p176
      // Predicated region
      $region25: #{tpu_custom_call.1} parent=5 // pred_check
        _
      $region26: #{tpu_custom_call.1} parent=5 // pred_check_branch
        %179 = sbr.rel (%p176) target = $region28
      $region27: #{tpu_custom_call.1} parent=5 // pred_region
        %s180 = ssub.s32 %s17, 1
        %s181 = sand.u32 %s44, 1
        %s182 = scalar_lea.sflag [#allocation3], %s181
        %s183 = sand.u32 %s44, 1
        %s184 = smul.addr %s183, 16
        %s185 = scalar_lea.vmem [#allocation2], %s184
        // Predicated region
        $region29: #{tpu_custom_call.1} parent=27 // pred_check
          %p186 = pneg %p57
        $region30: #{tpu_custom_call.1} parent=27 // pred_check_branch
          %188 = sbr.rel (%p186) target = $region32
        $region31: #{tpu_custom_call.1} parent=27 // pred_region
          %189 = dma.done %s182, 256
        $region32: #{tpu_custom_call.1} parent=27 // pred_fallthru
          _
        %s190 = sand.u32 %s72, 1
        %s191 = scalar_lea.sflag [#allocation6], %s190
        %s192 = sand.u32 %s72, 1
        %s193 = smul.addr %s192, 2
        %s194 = scalar_lea.vmem [#allocation5], %s193
        // Predicated region
        $region33: #{tpu_custom_call.1} parent=27 // pred_check
          %p195 = pneg %p85
        $region34: #{tpu_custom_call.1} parent=27 // pred_check_branch
          %197 = sbr.rel (%p195) target = $region36
        $region35: #{tpu_custom_call.1} parent=27 // pred_region
          %198 = dma.done %s191, 32
        $region36: #{tpu_custom_call.1} parent=27 // pred_fallthru
          _
        %s199 = sand.u32 %s44, 1
        %s200 = scalar_lea.sflag [#allocation3], %s199
        %s201 = sand.u32 %s44, 1
        %s202 = smul.addr %s201, 16
        %s203 = scalar_lea.vmem [#allocation2], %s202
        %p204 = pneg %p57
        %p205 = pneg %p54
        %s206 = sand.u32 %s72, 1
        %s207 = scalar_lea.sflag [#allocation6], %s206
        %s208 = sand.u32 %s72, 1
        %s209 = smul.addr %s208, 2
        %s210 = scalar_lea.vmem [#allocation5], %s209
        %p211 = pneg %p85
        %p212 = pneg %p82
        %p213 = pneg %p113
        %p214 = pneg %p110
        %s215 = sand.u32 %s100, 1
        %s216 = scalar_lea.sflag [#allocation4], %s215
        %s217 = sand.u32 %s100, 1
        %s218 = smul.addr %s217, 48
        %s219 = scalar_lea.vmem [#allocation7], %s218
        %s220 = smul.u32 2, %s27
        %s221 = smul.u32 2, %s27
        %v222 = vld [vmem:[%s185] sm:$0xff]
        %v223 = vld [vmem:[%s185 + $0x8] sm:$0xff]
        %v224 = vld [vmem:[%s194] sm:$0x3]
        %v225 = vlaneseq
        %v226 = vshrl.u32 %v225, 7
        %v227 = vsub.s32 0, %v226
        %v228 = vrot.slane %v224, %v227
        %v229 = vlaneseq
        %v230 = vshrl.u32 %v229, 7
        %v231 = vsub.s32 1, %v230
        %v232 = vrot.slane %v224, %v231
        %v233 = vlaneseq
        %v234 = vshrl.u32 %v233, 7
        %v235 = vadd.s32 %v234, 8
        %v236 = vlaneseq
        %v237 = vand.u32 %v236, 127
        %vm238 = vcmp.eq.s32.totalorder %v234, 0
        %vm239 = vcmp.eq.s32.totalorder %v235, 0
        %v240 = vrot.slane %v222, 7
        %v241 = vrot.slane %v223, 7
        %vm242 = vcmp.lt.s32.totalorder %v234, 1
        %v243 = vsel %vm242, %v240, %v241
        %v244 = vsel %vm242, %v241, %v240
        %v245 = vsel %vm238, %v228, %v244
        %v246 = vsel %vm239, %v228, %v243
        %vm247 = vcmp.eq.s32.totalorder %v234, 15
        %vm248 = vcmp.eq.s32.totalorder %v235, 15
        %v249 = vrot.slane %v222, 1
        %v250 = vrot.slane %v223, 1
        %vm251 = vcmp.lt.s32.totalorder %v234, 7
        %v252 = vsel %vm251, %v249, %v250
        %v253 = vsel %vm251, %v250, %v249
        %v254 = vsel %vm247, %v232, %v252
        %v255 = vsel %vm248, %v232, %v253
        %v256 = vadd.f32 %v245, %v254
        %v257 = vadd.f32 %v246, %v255
        %258 = vrot.lane.b32.xlu0 %v222, 127
        %v259 = vpop.permute.xlu0 %258
        %260 = vrot.lane.b32.xlu0 %v223, 127
        %v261 = vpop.permute.xlu0 %260
        %262 = vrot.lane.b32.xlu0 %v222, 1
        %v263 = vpop.permute.xlu0 %262
        %264 = vrot.lane.b32.xlu0 %v223, 1
        %v265 = vpop.permute.xlu0 %264
        %vm266 = vcmp.eq.s32.totalorder %v237, 0
        %v267 = vsel %vm266, %v259, %v263
        %v268 = vsel %vm266, %v261, %v265
        %vm269 = vcmp.eq.s32.totalorder %v237, 15
        %v270 = vsel %vm269, %v263, %v259
        %v271 = vsel %vm269, %v265, %v261
        %v272 = vadd.f32 %v267, %v270
        %v273 = vadd.f32 %v268, %v271
        %274 = vrot.lane.b32.xlu0 %v256, 127
        %v275 = vpop.permute.xlu0 %274
        %276 = vrot.lane.b32.xlu0 %v257, 127
        %v277 = vpop.permute.xlu0 %276
        %278 = vrot.lane.b32.xlu0 %v256, 1
        %v279 = vpop.permute.xlu0 %278
        %280 = vrot.lane.b32.xlu0 %v257, 1
        %v281 = vpop.permute.xlu0 %280
        %v282 = vsel %vm266, %v275, %v279
        %v283 = vsel %vm266, %v277, %v281
        %v284 = vsel %vm269, %v279, %v275
        %v285 = vsel %vm269, %v281, %v277
        %v286 = vadd.f32 %v282, %v284
        %v287 = vadd.f32 %v283, %v285
        %v288 = vadd.f32 %v272, %v256
        %v289 = vadd.f32 %v273, %v257
        %v290 = vmul.f32 %v288, 0.25
        %v291 = vmul.f32 %v289, 0.25
        %v292 = vmul.f32 %v286, 0.25
        %v293 = vmul.f32 %v287, 0.25
        %v294 = vmul.f32 %v272, 0.5
        %v295 = vmul.f32 %v273, 0.5
        %v296 = vmul.f32 %v256, 0.5
        %v297 = vmul.f32 %v257, 0.5
        %v298 = vand.u32 %v234, 1
        %v299 = vand.u32 %v235, 1
        %vm300 = vcmp.eq.s32.totalorder %v298, 1
        %vm301 = vcmp.eq.s32.totalorder %v299, 1
        %v302 = vand.u32 %v237, 1
        %vm303 = vcmp.eq.s32.totalorder %v302, 1
        %v304 = vsel %vm303, %v294, %v222
        %v305 = vsel %vm303, %v295, %v223
        %v306 = vsel %vm303, %v292, %v296
        %v307 = vsel %vm303, %v293, %v297
        %v308 = vsel %vm300, %v306, %v304
        %v309 = vsel %vm301, %v307, %v305
        %310 = vst [vmem:[%s219] sm:$0xff] %v308
        %311 = vst [vmem:[%s219 + $0x8] sm:$0xff] %v309
        %v312 = vsel %vm303, %v222, %v290
        %v313 = vsel %vm303, %v223, %v291
        %v314 = vsel %vm303, %v290, %v222
        %v315 = vsel %vm303, %v291, %v223
        %v316 = vsel %vm300, %v314, %v312
        %v317 = vsel %vm301, %v315, %v313
        %s318 = scalar_lea.vmem %s219, 16 [#allocation7]
        %319 = vst [vmem:[%s318] sm:$0xff] %v316
        %320 = vst [vmem:[%s318 + $0x8] sm:$0xff] %v317
        %v321 = vsel %vm303, %v296, %v292
        %v322 = vsel %vm303, %v297, %v293
        %v323 = vsel %vm303, %v222, %v294
        %v324 = vsel %vm303, %v223, %v295
        %v325 = vsel %vm300, %v323, %v321
        %v326 = vsel %vm301, %v324, %v322
        %s327 = scalar_lea.vmem %s219, 32 [#allocation7]
        %328 = vst [vmem:[%s327] sm:$0xff] %v325
        %329 = vst [vmem:[%s327 + $0x8] sm:$0xff] %v326
        %s330 = sand.u32 %s100, 1
        %s331 = scalar_lea.sflag [#allocation4], %s330
        %s332 = sand.u32 %s100, 1
        %s333 = smul.addr %s332, 48
        %s334 = scalar_lea.vmem [#allocation7], %s333
        // Predicated region
        $region37: #{tpu_custom_call.1} parent=27 // pred_check
          %p335 = pneg %p110
        $region38: #{tpu_custom_call.1} parent=27 // pred_check_branch
          %337 = sbr.rel (%p335) target = $region40
        $region39: #{tpu_custom_call.1} parent=27 // pred_region
          %s338 = smul.u32 2, %s27
          %s340 = ssub.s32 768, 768
          %341 = vsyncadd %s331, %s340
          %s342 = smul.addr %s26, 6
          %s343 = sadd.s32 %s338, %s342
          %s344 = smul.addr %s343, 128
          %s345 = scalar_lea.hbm %s2, %s344
          %s346 = sshll.u32 %s334, 4
          %s347 = int_to_ptr.vmem [resolvable:$true] %s346
          %352 = dma.vmem_to_hbm [thread:$0]  %s347, 768, %s345, %s331, 128, 128, 8
        $region40: #{tpu_custom_call.1} parent=27 // pred_fallthru
          _
      $region28: #{tpu_custom_call.1} parent=5 // pred_fallthru
        _
      %p353 = scmp.le.s32.totalorder 2, %s17
      // Predicated region
      $region41: #{tpu_custom_call.1} parent=5 // pred_check
        %p354 = pneg %p353
      $region42: #{tpu_custom_call.1} parent=5 // pred_check_branch
        %356 = sbr.rel (%p354) target = $region44
      $region43: #{tpu_custom_call.1} parent=5 // pred_region
        %s357 = ssub.s32 %s17, 2
        // Predicated region
        $region45: #{tpu_custom_call.1} parent=43 // pred_check
          %p358 = pneg %p116
        $region46: #{tpu_custom_call.1} parent=43 // pred_check_branch
          %360 = sbr.rel (%p358) target = $region48
        $region47: #{tpu_custom_call.1} parent=43 // pred_region
          %s361 = sand.u32 %s101, 1
          %s362 = scalar_lea.sflag [#allocation4], %s361
          %s363 = sand.u32 %s101, 1
          %s364 = smul.addr %s363, 48
          %s365 = scalar_lea.vmem [#allocation7], %s364
          %366 = dma.done %s362, 768
        $region48: #{tpu_custom_call.1} parent=43 // pred_fallthru
          _
      $region44: #{tpu_custom_call.1} parent=5 // pred_fallthru
        _
    $region6: #{tpu_custom_call.1} parent=1 // loop_footer
      %s21 = sadd.s32 1, %s17
    $region7: #{tpu_custom_call.1} parent=1 // loop_footer_branch
      %16 = sbr.rel target = $region3
    $region8: #{tpu_custom_call.1} parent=1 // loop_exit
      _
    %367 = vsyncpa [#allocation3], 1
    %s368 = scalar_lea.sflag [#allocation3], 1
    %369 = vsyncpa %s368, 1
    %370 = vsyncpa [#allocation6], 1
    %s371 = scalar_lea.sflag [#allocation6], 1
    %372 = vsyncpa %s371, 1
    %373 = vsyncpa [#allocation4], 1
    %s374 = scalar_lea.sflag [#allocation4], 1
    %375 = vsyncpa %s374, 1

</llo_original>
